<compile_context>
chip_gen: v7x
topology: tpu7x:2x2x1
jax: 0.10.0
libtpu: 0.0.40
codegen_flags: <defaults>
</compile_context>

<pallas_src>
import functools

import jax
import jax.numpy as jnp
from jax.experimental import pallas as pl
from jax.experimental.pallas import tpu as pltpu


_LANE_CAP = 512  # keep L = blk*T <= 512: vreg pressure + kron waste stay bounded


def _choose_blk(bd, t):
    """Pick slabs-per-step so the lane width BLK*T is a multiple of 128.

    Prefers the LARGEST lane-dense tile under the 512-lane cap (amortizes the
    ~0.35 us/step fixed overhead), and among those prefers configurations that
    leave >= 2 grid steps so the "parallel" grid axis can shard across v7x's
    two TensorCores.  Falls back to a full-extent block when no 128-multiple
    divisor exists (legal, just masked partial stores).
    """
    divisors = [blk for blk in range(1, bd + 1) if bd % blk == 0]
    dense = [blk for blk in divisors if (blk * t) % 128 == 0]
    capped = [blk for blk in dense if blk * t <= _LANE_CAP]
    pool = capped if capped else dense
    if pool:
        multi = [blk for blk in pool if bd // blk >= 2]
        return max(multi) if multi else max(pool)
    return bd  # lane dim == full array extent (still a legal block)


def _vmem_limit_bytes():
    """Per-generation scoped-VMEM limit (v7x has 64 MiB physical, others 128)."""
    try:
        kind = jax.devices()[0].device_kind.lower()
    except Exception:  # pragma: no cover - be conservative if query fails
        kind = ""
    if "7" in kind:
        return 32 * 1024 * 1024
    return 96 * 1024 * 1024


def _gcn_fused_kernel(mstack_ref, x_ref, wdiag_ref, b_ref, out_ref, *, hops, n):
    """One lane-dense [N, L] slab (L = BLK*T) through all hops + gcnLinear."""
    mstack = mstack_ref[...]                                 # [3N, N] constant
    x = x_ref[...]                                           # [N, L]
    # gcnLinear contribution of hop 0 (H[0] == X).
    acc = jnp.dot(x, wdiag_ref[0], preferred_element_type=jnp.float32)
    hbefore = x
    for k in range(hops):                                    # static unrolled
        # One MXU matmul gives all three mixed propagations at once.
        prod = jnp.dot(mstack, hbefore,
                       preferred_element_type=jnp.float32)   # [3N, L]
        hlow = prod[0 * n:1 * n]
        hmid = prod[1 * n:2 * n]
        hhigh = prod[2 * n:3 * n]
        hnow = jax.nn.sigmoid(
            hlow * jax.nn.sigmoid(hhigh + hmid)
            + hmid * jax.nn.sigmoid(hlow + hhigh)
            + hhigh * jax.nn.sigmoid(hlow + hmid))
        z = x + hnow
        hnow = jax.nn.sigmoid(z) * jnp.tanh(z)
        # gcnLinear contribution of hop k+1, folded into the loop.
        acc = acc + jnp.dot(hnow, wdiag_ref[k + 1],
                            preferred_element_type=jnp.float32)
        hbefore = hnow
    out_ref[...] = acc + b_ref[...]


@functools.partial(jax.jit, static_argnames=("hops",))
def gcn_forward(X, m1, m2, scalar_params, w, b, *, hops):
    B, D, N, T = X.shape
    BD = B * D
    blk = _choose_blk(BD, T)
    L = blk * T
    num_blocks = BD // blk

    # ---- mixing matrices, hoisted out of the kernel (constant per call) ----
    A = jax.nn.softmax(jnp.maximum(m1 @ m2, 0.0), axis=1)
    I = jnp.eye(N, dtype=jnp.float32)
    p_low, a_low = scalar_params[0], scalar_params[1]
    p_mid, a_mid = scalar_params[2], scalar_params[3]
    p_high, a_high = scalar_params[4], scalar_params[5]
    MLow = p_low * (a_low * A + (1.0 - a_low) * I)
    MMid = p_mid * (A * A - a_mid * I)            # torch.pow(A, 2) is elementwise
    MHigh = p_high * (-a_high * A + (1.0 - a_high) * I)

    # Pad N to the f32 sublane tile (8) so in-kernel row slices stay aligned.
    Np = ((N + 7) // 8) * 8
    pad = Np - N
    if pad:
        MLow = jnp.pad(MLow, ((0, pad), (0, pad)))
        MMid = jnp.pad(MMid, ((0, pad), (0, pad)))
        MHigh = jnp.pad(MHigh, ((0, pad), (0, pad)))
    mstack = jnp.concatenate([MLow, MMid, MHigh], axis=0)    # [3Np, Np]

    # [B, D, N, T] -> [Np, BD*T]; lanes ordered ((b*D + d)*T + t).
    x2d = jnp.transpose(X, (2, 0, 1, 3)).reshape(N, BD * T)
    if pad:
        x2d = jnp.pad(x2d, ((0, pad), (0, 0)))

    # Per-hop block-diagonal weights: Wdiag_k = kron(I_blk, W_k^T) keeps the
    # gcnLinear a lane-dense [Np, L] @ [L, L] matmul inside the kernel.
    wt = w.T                                                 # [T*(hops+1), T]
    eye_blk = jnp.eye(blk, dtype=jnp.float32)
    wdiag = jnp.stack([jnp.kron(eye_blk, wt[k * T:(k + 1) * T, :])
                       for k in range(hops + 1)])            # [hops+1, L, L]
    b_tiled = jnp.tile(b, blk).reshape(1, L)

    kernel = functools.partial(_gcn_fused_kernel, hops=hops, n=Np)
    out2d = pl.pallas_call(
        kernel,
        out_shape=jax.ShapeDtypeStruct((Np, BD * T), jnp.float32),
        grid_spec=pltpu.PrefetchScalarGridSpec(
            num_scalar_prefetch=0,
            grid=(num_blocks,),
            in_specs=[
                pl.BlockSpec((3 * Np, Np), lambda i: (0, 0)),            # mstack
                pl.BlockSpec((Np, L), lambda i: (0, i)),                 # x slab
                pl.BlockSpec((hops + 1, L, L), lambda i: (0, 0, 0)),     # Wdiag
                pl.BlockSpec((1, L), lambda i: (0, 0)),                  # bias
            ],
            out_specs=pl.BlockSpec((Np, L), lambda i: (0, i)),
        ),
        compiler_params=pltpu.CompilerParams(
            dimension_semantics=("parallel",),     # shard BD blocks across TCs
            vmem_limit_bytes=_vmem_limit_bytes()),
    )(mstack, x2d, wdiag, b_tiled)

    out2d = out2d[:N]
    return out2d.reshape(N, B, D, T).transpose(1, 2, 0, 3)


def gcn_reference(X, m1, m2, p, w, b, hops):
    """Plain-JAX mirror of the PyTorch forward (eval mode) for verification."""
    A = jax.nn.softmax(jnp.maximum(m1 @ m2, 0.0), axis=1)
    I = jnp.eye(A.shape[0], dtype=jnp.float32)
    pLow, aLow, pMid, aMid, pHigh, aHigh = (p[i] for i in range(6))
    MLow = pLow * (aLow * A + (1.0 - aLow) * I)
    MMid = pMid * (A ** 2 - aMid * I)
    MHigh = pHigh * (-aHigh * A + (1.0 - aHigh) * I)
    H = [X]
    Hb = X
    for _ in range(hops):
        HLow = jnp.einsum('nk,bdkt->bdnt', MLow, Hb)
        HMid = jnp.einsum('nk,bdkt->bdnt', MMid, Hb)
        HHigh = jnp.einsum('nk,bdkt->bdnt', MHigh, Hb)
        Hnow = jax.nn.sigmoid(HLow * jax.nn.sigmoid(HHigh + HMid)
                              + HMid * jax.nn.sigmoid(HLow + HHigh)
                              + HHigh * jax.nn.sigmoid(HLow + HMid))
        z = X + Hnow
        Hnow = jax.nn.sigmoid(z) * jnp.tanh(z)
        H.append(Hnow)
        Hb = Hnow
    Hcat = jnp.concatenate(H, axis=3)
    return jnp.einsum('bdnk,tk->bdnt', Hcat, w) + b


if __name__ == "__main__":
    # B*D = 16 with T = 16 -> blk = 8 (L = 128), num_blocks = 2, so the
    # ("parallel",) grid axis can actually shard across two TensorCores.
    B, D, N, T, hops = 2, 8, 8, 16, 2

    key = jax.random.PRNGKey(0)
    ks = jax.random.split(key, 6)
    X = jax.random.normal(ks[0], (B, D, N, T), dtype=jnp.float32)
    m1 = jax.random.uniform(ks[1], (N, N), dtype=jnp.float32)      # trainMatrix1
    m2 = jax.random.uniform(ks[2], (N, N), dtype=jnp.float32)      # trainMatrix2
    # pLow, aLow, pMid, aMid, pHigh, aHigh ~ U[0,1), matching torch.rand(1)
    scalar_params = jax.random.uniform(ks[3], (6,), dtype=jnp.float32)
    w = jax.random.normal(ks[4], (T, T * (hops + 1)), dtype=jnp.float32) * 0.1
    b = jax.random.normal(ks[5], (T,), dtype=jnp.float32) * 0.1

    out = jax.block_until_ready(
        gcn_forward(X, m1, m2, scalar_params, w, b, hops=hops))

    ref = gcn_reference(X, m1, m2, scalar_params, w, b, hops)
    assert out.shape == (B, D, N, T)
    assert jnp.allclose(out, ref, rtol=1e-3, atol=1e-3), "mismatch vs JAX reference"

    print("KERNEL_OK")
</pallas_src>

<mosaic_0001>
module attributes {stable_mosaic.version = 11 : i64} {
  func.func @_gcn_fused_kernel(%arg0: i32, %arg1: memref<24x8xf32, #tpu.memory_space<vmem>>, %arg2: memref<8x128xf32, #tpu.memory_space<vmem>>, %arg3: memref<3x128x128xf32, #tpu.memory_space<vmem>>, %arg4: memref<1x128xf32, #tpu.memory_space<vmem>>, %arg5: memref<8x128xf32, #tpu.memory_space<vmem>>) attributes {dimension_semantics = [#tpu.dimension_semantics<parallel>], iteration_bounds = array<i64: 2>, scalar_prefetch = 0 : i64, scratch_operands = 0 : i64, tpu.core_type = #tpu.core_type<tc>, window_params = [{pipeline_mode = #tpu.pipeline_mode<synchronous>, transform_indices = @transform_0, window_bounds = array<i64: 24, 8>}, {transform_indices = @transform_1, window_bounds = array<i64: 8, 128>}, {pipeline_mode = #tpu.pipeline_mode<synchronous>, transform_indices = @transform_2, window_bounds = array<i64: 3, 128, 128>}, {pipeline_mode = #tpu.pipeline_mode<synchronous>, transform_indices = @transform_3, window_bounds = array<i64: 1, 128>}, {transform_indices = @transform_4, window_bounds = array<i64: 8, 128>}]} {
    %c0 = arith.constant 0 : index
    %c0_0 = arith.constant 0 : index
    %0 = vector.load %arg1[%c0, %c0_0] : memref<24x8xf32, #tpu.memory_space<vmem>>, vector<24x8xf32>
    %c0_1 = arith.constant 0 : index
    %c0_2 = arith.constant 0 : index
    %1 = vector.load %arg2[%c0_1, %c0_2] : memref<8x128xf32, #tpu.memory_space<vmem>>, vector<8x128xf32>
    %c0_3 = arith.constant 0 : index
    %c0_4 = arith.constant 0 : index
    %c0_5 = arith.constant 0 : index
    %2 = vector.load %arg3[%c0_3, %c0_4, %c0_5] : memref<3x128x128xf32, #tpu.memory_space<vmem>>, vector<1x128x128xf32>
    %3 = vector.shape_cast %2 : vector<1x128x128xf32> to vector<128x128xf32>
    %cst = arith.constant dense<0.000000e+00> : vector<8x128xf32>
    %4 = tpu.matmul %1, %3, %cst {dimension_numbers = #tpu.dot_dimension_numbers<[1], [0], [0], [1], [0, 0, 1, 1], [], []>} : vector<8x128xf32>, vector<128x128xf32>, vector<8x128xf32> -> vector<8x128xf32>
    %cst_6 = arith.constant dense<0.000000e+00> : vector<24x128xf32>
    %5 = tpu.matmul %0, %1, %cst_6 {dimension_numbers = #tpu.dot_dimension_numbers<[1], [0], [0], [1], [0, 0, 1, 1], [], []>} : vector<24x8xf32>, vector<8x128xf32>, vector<24x128xf32> -> vector<24x128xf32>
    %6 = vector.extract_strided_slice %5 {offsets = [0, 0], sizes = [8, 128], strides = [1, 1]} : vector<24x128xf32> to vector<8x128xf32>
    %7 = vector.extract_strided_slice %5 {offsets = [8, 0], sizes = [8, 128], strides = [1, 1]} : vector<24x128xf32> to vector<8x128xf32>
    %8 = vector.extract_strided_slice %5 {offsets = [16, 0], sizes = [8, 128], strides = [1, 1]} : vector<24x128xf32> to vector<8x128xf32>
    %9 = arith.addf %8, %7 : vector<8x128xf32>
    %10 = arith.negf %9 : vector<8x128xf32>
    %11 = math.exp %10 : vector<8x128xf32>
    %cst_7 = arith.constant 1.000000e+00 : f32
    %12 = vector.broadcast %cst_7 : f32 to vector<8x128xf32>
    %13 = arith.addf %12, %11 : vector<8x128xf32>
    %14 = arith.divf %12, %13 : vector<8x128xf32>
    %15 = arith.mulf %6, %14 : vector<8x128xf32>
    %16 = arith.addf %6, %8 : vector<8x128xf32>
    %17 = arith.negf %16 : vector<8x128xf32>
    %18 = math.exp %17 : vector<8x128xf32>
    %cst_8 = arith.constant 1.000000e+00 : f32
    %19 = vector.broadcast %cst_8 : f32 to vector<8x128xf32>
    %20 = arith.addf %19, %18 : vector<8x128xf32>
    %21 = arith.divf %19, %20 : vector<8x128xf32>
    %22 = arith.mulf %7, %21 : vector<8x128xf32>
    %23 = arith.addf %15, %22 : vector<8x128xf32>
    %24 = arith.addf %6, %7 : vector<8x128xf32>
    %25 = arith.negf %24 : vector<8x128xf32>
    %26 = math.exp %25 : vector<8x128xf32>
    %cst_9 = arith.constant 1.000000e+00 : f32
    %27 = vector.broadcast %cst_9 : f32 to vector<8x128xf32>
    %28 = arith.addf %27, %26 : vector<8x128xf32>
    %29 = arith.divf %27, %28 : vector<8x128xf32>
    %30 = arith.mulf %8, %29 : vector<8x128xf32>
    %31 = arith.addf %23, %30 : vector<8x128xf32>
    %32 = arith.negf %31 : vector<8x128xf32>
    %33 = math.exp %32 : vector<8x128xf32>
    %cst_10 = arith.constant 1.000000e+00 : f32
    %34 = vector.broadcast %cst_10 : f32 to vector<8x128xf32>
    %35 = arith.addf %34, %33 : vector<8x128xf32>
    %36 = arith.divf %34, %35 : vector<8x128xf32>
    %37 = arith.addf %1, %36 : vector<8x128xf32>
    %38 = arith.negf %37 : vector<8x128xf32>
    %39 = math.exp %38 : vector<8x128xf32>
    %cst_11 = arith.constant 1.000000e+00 : f32
    %40 = vector.broadcast %cst_11 : f32 to vector<8x128xf32>
    %41 = arith.addf %40, %39 : vector<8x128xf32>
    %42 = arith.divf %40, %41 : vector<8x128xf32>
    %43 = math.tanh %37 : vector<8x128xf32>
    %44 = arith.mulf %42, %43 : vector<8x128xf32>
    %c1 = arith.constant 1 : index
    %c0_12 = arith.constant 0 : index
    %c0_13 = arith.constant 0 : index
    %45 = vector.load %arg3[%c1, %c0_12, %c0_13] : memref<3x128x128xf32, #tpu.memory_space<vmem>>, vector<1x128x128xf32>
    %46 = vector.shape_cast %45 : vector<1x128x128xf32> to vector<128x128xf32>
    %cst_14 = arith.constant dense<0.000000e+00> : vector<8x128xf32>
    %47 = tpu.matmul %44, %46, %cst_14 {dimension_numbers = #tpu.dot_dimension_numbers<[1], [0], [0], [1], [0, 0, 1, 1], [], []>} : vector<8x128xf32>, vector<128x128xf32>, vector<8x128xf32> -> vector<8x128xf32>
    %48 = arith.addf %4, %47 : vector<8x128xf32>
    %cst_15 = arith.constant dense<0.000000e+00> : vector<24x128xf32>
    %49 = tpu.matmul %0, %44, %cst_15 {dimension_numbers = #tpu.dot_dimension_numbers<[1], [0], [0], [1], [0, 0, 1, 1], [], []>} : vector<24x8xf32>, vector<8x128xf32>, vector<24x128xf32> -> vector<24x128xf32>
    %50 = vector.extract_strided_slice %49 {offsets = [0, 0], sizes = [8, 128], strides = [1, 1]} : vector<24x128xf32> to vector<8x128xf32>
    %51 = vector.extract_strided_slice %49 {offsets = [8, 0], sizes = [8, 128], strides = [1, 1]} : vector<24x128xf32> to vector<8x128xf32>
    %52 = vector.extract_strided_slice %49 {offsets = [16, 0], sizes = [8, 128], strides = [1, 1]} : vector<24x128xf32> to vector<8x128xf32>
    %53 = arith.addf %52, %51 : vector<8x128xf32>
    %54 = arith.negf %53 : vector<8x128xf32>
    %55 = math.exp %54 : vector<8x128xf32>
    %cst_16 = arith.constant 1.000000e+00 : f32
    %56 = vector.broadcast %cst_16 : f32 to vector<8x128xf32>
    %57 = arith.addf %56, %55 : vector<8x128xf32>
    %58 = arith.divf %56, %57 : vector<8x128xf32>
    %59 = arith.mulf %50, %58 : vector<8x128xf32>
    %60 = arith.addf %50, %52 : vector<8x128xf32>
    %61 = arith.negf %60 : vector<8x128xf32>
    %62 = math.exp %61 : vector<8x128xf32>
    %cst_17 = arith.constant 1.000000e+00 : f32
    %63 = vector.broadcast %cst_17 : f32 to vector<8x128xf32>
    %64 = arith.addf %63, %62 : vector<8x128xf32>
    %65 = arith.divf %63, %64 : vector<8x128xf32>
    %66 = arith.mulf %51, %65 : vector<8x128xf32>
    %67 = arith.addf %59, %66 : vector<8x128xf32>
    %68 = arith.addf %50, %51 : vector<8x128xf32>
    %69 = arith.negf %68 : vector<8x128xf32>
    %70 = math.exp %69 : vector<8x128xf32>
    %cst_18 = arith.constant 1.000000e+00 : f32
    %71 = vector.broadcast %cst_18 : f32 to vector<8x128xf32>
    %72 = arith.addf %71, %70 : vector<8x128xf32>
    %73 = arith.divf %71, %72 : vector<8x128xf32>
    %74 = arith.mulf %52, %73 : vector<8x128xf32>
    %75 = arith.addf %67, %74 : vector<8x128xf32>
    %76 = arith.negf %75 : vector<8x128xf32>
    %77 = math.exp %76 : vector<8x128xf32>
    %cst_19 = arith.constant 1.000000e+00 : f32
    %78 = vector.broadcast %cst_19 : f32 to vector<8x128xf32>
    %79 = arith.addf %78, %77 : vector<8x128xf32>
    %80 = arith.divf %78, %79 : vector<8x128xf32>
    %81 = arith.addf %1, %80 : vector<8x128xf32>
    %82 = arith.negf %81 : vector<8x128xf32>
    %83 = math.exp %82 : vector<8x128xf32>
    %cst_20 = arith.constant 1.000000e+00 : f32
    %84 = vector.broadcast %cst_20 : f32 to vector<8x128xf32>
    %85 = arith.addf %84, %83 : vector<8x128xf32>
    %86 = arith.divf %84, %85 : vector<8x128xf32>
    %87 = math.tanh %81 : vector<8x128xf32>
    %88 = arith.mulf %86, %87 : vector<8x128xf32>
    %c2 = arith.constant 2 : index
    %c0_21 = arith.constant 0 : index
    %c0_22 = arith.constant 0 : index
    %89 = vector.load %arg3[%c2, %c0_21, %c0_22] : memref<3x128x128xf32, #tpu.memory_space<vmem>>, vector<1x128x128xf32>
    %90 = vector.shape_cast %89 : vector<1x128x128xf32> to vector<128x128xf32>
    %cst_23 = arith.constant dense<0.000000e+00> : vector<8x128xf32>
    %91 = tpu.matmul %88, %90, %cst_23 {dimension_numbers = #tpu.dot_dimension_numbers<[1], [0], [0], [1], [0, 0, 1, 1], [], []>} : vector<8x128xf32>, vector<128x128xf32>, vector<8x128xf32> -> vector<8x128xf32>
    %92 = arith.addf %48, %91 : vector<8x128xf32>
    %c0_24 = arith.constant 0 : index
    %c0_25 = arith.constant 0 : index
    %93 = vector.load %arg4[%c0_24, %c0_25] : memref<1x128xf32, #tpu.memory_space<vmem>>, vector<1x128xf32>
    %94 = vector.broadcast %93 : vector<1x128xf32> to vector<8x128xf32>
    %95 = arith.addf %92, %94 : vector<8x128xf32>
    %c0_26 = arith.constant 0 : index
    %c0_27 = arith.constant 0 : index
    %96 = vector.load %arg5[%c0_26, %c0_27] : memref<8x128xf32, #tpu.memory_space<vmem>>, vector<8x128xf32>
    tpu.vector_store %arg5[%c0_26, %c0_27], %95 {strides = array<i32>} : memref<8x128xf32, #tpu.memory_space<vmem>>, vector<8x128xf32>,
    return
  }
  func.func @transform_0(%arg0: i32) -> (i32, i32) {
    %c0_i32 = arith.constant 0 : i32
    %c0_i32_0 = arith.constant 0 : i32
    %c0_i32_1 = arith.constant 0 : i32
    return %c0_i32, %c0_i32_0 : i32, i32
  }
  func.func @transform_1(%arg0: i32) -> (i32, i32) {
    %c0_i32 = arith.constant 0 : i32
    %c0_i32_0 = arith.constant 0 : i32
    return %c0_i32, %arg0 : i32, i32
  }
  func.func @transform_2(%arg0: i32) -> (i32, i32, i32) {
    %c0_i32 = arith.constant 0 : i32
    %c0_i32_0 = arith.constant 0 : i32
    %c0_i32_1 = arith.constant 0 : i32
    %c0_i32_2 = arith.constant 0 : i32
    return %c0_i32, %c0_i32_0, %c0_i32_1 : i32, i32, i32
  }
  func.func @transform_3(%arg0: i32) -> (i32, i32) {
    %c0_i32 = arith.constant 0 : i32
    %c0_i32_0 = arith.constant 0 : i32
    %c0_i32_1 = arith.constant 0 : i32
    return %c0_i32, %c0_i32_0 : i32, i32
  }
  func.func @transform_4(%arg0: i32) -> (i32, i32) {
    %c0_i32 = arith.constant 0 : i32
    %c0_i32_0 = arith.constant 0 : i32
    return %c0_i32, %arg0 : i32, i32
  }
}

</mosaic_0001>

<llo_original>
// kernel: tile.8
$region0: #{tile.8}
  #allocation0 [shape = 's32[1]{0}', space=sflag, size = 0x4, scoped, tag = 'scoped memory for tile.8']
  %s0 = inlined_call_operand.vmem [shape: f32[16], index: 0, kind: input, shape index: {}]
  %s1 = inlined_call_operand.vmem [shape: f32[8,16], index: 1, kind: output, shape index: {}]
  // Predicated region
  $region2: #{tile.8} parent=0 // pred_check
    _
  $region3: #{tile.8} parent=0 // pred_check_branch
    %3 = sbr.rel (0) target = $region5
  $region4: #{tile.8} parent=0 // pred_region
    _
  $region5: #{tile.8} parent=0 // pred_fallthru
    _
  %v4 = vld [vmem:[%s0] ss:$0 sm:$0xff]
  %5 = vst [vmem:[%s1] sm:$0xff] %v4

// kernel: tile.9
$region0: #{tile.9}
  %s0 = inlined_call_operand.vmem [shape: f32[8,16], index: 0, kind: input, shape index: {}]
  %s1 = inlined_call_operand.hbm [shape: f32[1,128], index: 1, kind: output, shape index: {}]
  $region1: #{tile.9} parent=0
    #allocation0 [shape = 'u8[512]{0}', space=vmem, size = 0x400, scoped, tag = 'operand span for operand 1']
    #allocation1 [shape = 's32[1]{0}', space=sflag, size = 0x4, scoped, tag = 'scoped memory for tile.9']
    #allocation2 [shape = 'u8[4096]{0}', space=vmem, size = 0x1000, scoped, tag = 'scoped mem for output reshape']
    %2 = vsyncpa [#allocation1], 0
    %v3 = vld [vmem:[%s0] sm:$0x1]
    %vm4 = vcmask 130048
    %5 = vst.msk [vmem:[#allocation2] sm:$0x1] %vm4, %v3
    %s6 = scalar_lea.vmem %s0, 7
    %v7 = vld [vmem:[%s6] sm:$0x1]
    %8 = vrot.lane.b32.xlu0 %v7, 112
    %v9 = vpop.permute.xlu0 %8
    %vm10 = vcmask 1048448
    %11 = vst.msk [vmem:[#allocation2] sm:$0x1] %vm10, %v9
    %s12 = scalar_lea.vmem %s0, 6
    %v13 = vld [vmem:[%s12] sm:$0x1]
    %14 = vrot.lane.b32.xlu0 %v13, 96
    %v15 = vpop.permute.xlu0 %14
    %vm16 = vcmask 917248
    %17 = vst.msk [vmem:[#allocation2] sm:$0x1] %vm16, %v15
    %s18 = scalar_lea.vmem %s0, 5
    %v19 = vld [vmem:[%s18] sm:$0x1]
    %20 = vrot.lane.b32.xlu0 %v19, 80
    %v21 = vpop.permute.xlu0 %20
    %vm22 = vcmask 786048
    %23 = vst.msk [vmem:[#allocation2] sm:$0x1] %vm22, %v21
    %s24 = scalar_lea.vmem %s0, 4
    %v25 = vld [vmem:[%s24] sm:$0x1]
    %26 = vrot.lane.b32.xlu0 %v25, 64
    %v27 = vpop.permute.xlu0 %26
    %vm28 = vcmask 654848
    %29 = vst.msk [vmem:[#allocation2] sm:$0x1] %vm28, %v27
    %s30 = scalar_lea.vmem %s0, 3
    %v31 = vld [vmem:[%s30] sm:$0x1]
    %32 = vrot.lane.b32.xlu0 %v31, 48
    %v33 = vpop.permute.xlu0 %32
    %vm34 = vcmask 523648
    %35 = vst.msk [vmem:[#allocation2] sm:$0x1] %vm34, %v33
    %s36 = scalar_lea.vmem %s0, 2
    %v37 = vld [vmem:[%s36] sm:$0x1]
    %38 = vrot.lane.b32.xlu0 %v37, 32
    %v39 = vpop.permute.xlu0 %38
    %vm40 = vcmask 392448
    %41 = vst.msk [vmem:[#allocation2] sm:$0x1] %vm40, %v39
    %s42 = scalar_lea.vmem %s0, 1
    %v43 = vld [vmem:[%s42] sm:$0x1]
    %44 = vrot.lane.b32.xlu0 %v43, 16
    %v45 = vpop.permute.xlu0 %44
    %vm46 = vcmask 261248
    %47 = vst.msk [vmem:[#allocation2] sm:$0x1] %vm46, %v45
    %s49 = sshllo.u32 0, 1
    %v51 = vld [vmem:[#allocation2] sm:%s49]
    %s52 = sshllo.u32 0, 1
    %53 = vst [vmem:[#allocation0] sm:%s52] %v51
    %s55 = ssub.s32 16, 16
    %56 = vsyncadd [#allocation1], %s55
    %s58 = sshll.u32 [#allocation0], 4
    %s59 = int_to_ptr.vmem [resolvable:$true] %s58
    %61 = dma.vmem_to_hbm [thread:$0]  %s59, 16, %s1, [#allocation1]
    %62 = dma.done [#allocation1], 16
    %63 = vsyncpa [#allocation1], 1

// kernel: gcn_forward.1
$region0: #{gcn_forward.1}
  #allocation0 [shape = 'u32[]', space=smem, size = 0x4, offset = 0x4, fixed_abs, tag = 'smem constant byte address 0x4 - core index']
  #allocation1 [shape = 'u32[144,128]{1,0:T(1,128)}', space=vmem, size = 0x12000, scoped, tag = 'internal scratch']
  %s0 = inlined_call_operand.hbm [shape: f32[24,8], index: 0, kind: input, shape index: {}]
  %s1 = inlined_call_operand.hbm [shape: f32[8,256], index: 1, kind: input, shape index: {}]
  %s2 = inlined_call_operand.hbm [shape: f32[3,128,128], index: 2, kind: input, shape index: {}]
  %s3 = inlined_call_operand.hbm [shape: f32[1,128], index: 3, kind: input, shape index: {}]
  %s4 = inlined_call_operand.hbm [shape: f32[8,256], index: 4, kind: output, shape index: {}]
  %s5 = sld [smem:[#allocation0]]
  $region65: #{gcn_forward.1} parent=0
    _
  %s7 = ssub.s32 1, %s5
  %s8 = scalar_select 0, %s7, %s5
  $region1: #{gcn_forward.1} parent=0
    #allocation2 [shape = 'u8[12288]{0}', space=vmem, size = 0x3000, scoped, tag = 'input window, operand 0, single buffered']
    #allocation3 [shape = 's32[2]{0}', space=sflag, size = 0x8, scoped, tag = 'scoped memory for gcn_forward.1']
    #allocation4 [shape = 's32[2]{0}', space=sflag, size = 0x8, scoped, tag = 'scoped memory for gcn_forward.1']
    #allocation5 [shape = 'u8[8192]{0}', space=vmem, size = 0x2000, scoped, tag = 'input window, operand 1']
    #allocation6 [shape = 's32[2]{0}', space=sflag, size = 0x8, scoped, tag = 'scoped memory for gcn_forward.1']
    #allocation7 [shape = 'u8[196608]{0}', space=vmem, size = 0x30000, scoped, tag = 'input window, operand 2, single buffered']
    #allocation8 [shape = 'u8[512]{0}', space=vmem, size = 0x400, scoped, tag = 'input window, operand 3, single buffered']
    #allocation9 [shape = 's32[1]{0}', space=sflag, size = 0x4, scoped, tag = 'scoped memory for gcn_forward.1']
    #allocation10 [shape = 'u8[8192]{0}', space=vmem, size = 0x2000, scoped, tag = 'output window, operand 0']
    %9 = vsyncpa [#allocation3], 0
    %10 = vsyncpa [#allocation6], 0
    %s11 = scalar_lea.sflag [#allocation6], 1
    %12 = vsyncpa %s11, 0
    %13 = vsyncpa [#allocation9], 0
    %14 = vsyncpa [#allocation4], 0
    %s15 = scalar_lea.sflag [#allocation4], 1
    %16 = vsyncpa %s15, 0
    loop: start=0, step=1, limit=4
    $region2: #{gcn_forward.1} parent=1 // loop_pre_header
      _
    $region3: #{gcn_forward.1} parent=1 // loop_header
      %s18 = sphi 0, %s22
      %p19 = scmp.ge.s32.totalorder %s18, 4
      %s26 = sphi 0, %s26
      %s28 = sphi 0, %s26
      %s29 = sphi 0, %s28
      %s43 = sphi 0, %s29
      %s49 = sphi 0, %s51
      %s52 = sphi 0, %s49
      %s53 = sphi 0, %s52
      %s69 = sphi 0, %s53
      %s73 = sphi 0, %s73
      %s75 = sphi 0, %s73
      %s76 = sphi 0, %s75
      %s90 = sphi 0, %s76
      %s94 = sphi 0, %s94
      %s96 = sphi 0, %s94
      %s97 = sphi 0, %s96
      %s111 = sphi 0, %s97
      %s117 = sphi 0, %s119
      %s120 = sphi 0, %s117
      %s121 = sphi 0, %s120
      %s137 = sphi 0, %s121
    $region4: #{gcn_forward.1} parent=1 // loop_header_branch
      %21 = sbr.rel (%p19) target = $region8
    $region5: #{gcn_forward.1} parent=1 // loop_body
      %s23 = ssub.s32 %s18, 1
      %s24 = ssub.s32 %s18, 2
      %s25 = sadd.s32 %s18, 1
      %s27 = sadd.s32 %s26, 1
      %p30 = scmp.eq.s32.totalorder %s18, 1
      %p31 = scmp.ne.s32.totalorder %s26, %s28
      %p32 = scmp.eq.s32.totalorder %s18, 0
      %p33 = por %p31, %p32
      %p34 = scmp.ne.s32.totalorder %s26, %s28
      %p35 = scmp.eq.s32.totalorder %s23, 1
      %p36 = por %p34, %p35
      %p37 = scmp.ne.s32.totalorder %s28, %s29
      %p38 = scmp.eq.s32.totalorder %s23, 0
      %p39 = por %p37, %p38
      %p40 = scmp.ne.s32.totalorder %s28, %s29
      %p41 = scmp.eq.s32.totalorder %s24, 1
      %p42 = por %p40, %p41
      %p44 = scmp.ne.s32.totalorder %s29, %s43
      %p45 = scmp.eq.s32.totalorder %s24, 0
      %p46 = por %p44, %p45
      %s47 = ssub.s32 %s18, %s25
      %p48 = scmp.eq.s32.totalorder %s47, 0
      %s50 = sadd.s32 %s49, 1
      %s51 = scalar_select %p48, %s49, %s50
      %p54 = pneg %p48
      %p55 = scmp.eq.s32.totalorder %s18, 1
      %p56 = por %p54, %p55
      %p57 = scmp.ne.s32.totalorder %s49, %s52
      %p58 = scmp.eq.s32.totalorder %s18, 0
      %p59 = por %p57, %p58
      %p60 = scmp.ne.s32.totalorder %s49, %s52
      %p61 = scmp.eq.s32.totalorder %s23, 1
      %p62 = por %p60, %p61
      %p63 = scmp.ne.s32.totalorder %s52, %s53
      %p64 = scmp.eq.s32.totalorder %s23, 0
      %p65 = por %p63, %p64
      %p66 = scmp.ne.s32.totalorder %s52, %s53
      %p67 = scmp.eq.s32.totalorder %s24, 1
      %p68 = por %p66, %p67
      %p70 = scmp.ne.s32.totalorder %s53, %s69
      %p71 = scmp.eq.s32.totalorder %s24, 0
      %p72 = por %p70, %p71
      %s74 = sadd.s32 %s73, 1
      %p77 = scmp.eq.s32.totalorder %s18, 1
      %p78 = scmp.ne.s32.totalorder %s73, %s75
      %p79 = scmp.eq.s32.totalorder %s18, 0
      %p80 = por %p78, %p79
      %p81 = scmp.ne.s32.totalorder %s73, %s75
      %p82 = scmp.eq.s32.totalorder %s23, 1
      %p83 = por %p81, %p82
      %p84 = scmp.ne.s32.totalorder %s75, %s76
      %p85 = scmp.eq.s32.totalorder %s23, 0
      %p86 = por %p84, %p85
      %p87 = scmp.ne.s32.totalorder %s75, %s76
      %p88 = scmp.eq.s32.totalorder %s24, 1
      %p89 = por %p87, %p88
      %p91 = scmp.ne.s32.totalorder %s76, %s90
      %p92 = scmp.eq.s32.totalorder %s24, 0
      %p93 = por %p91, %p92
      %s95 = sadd.s32 %s94, 1
      %p98 = scmp.eq.s32.totalorder %s18, 1
      %p99 = scmp.ne.s32.totalorder %s94, %s96
      %p100 = scmp.eq.s32.totalorder %s18, 0
      %p101 = por %p99, %p100
      %p102 = scmp.ne.s32.totalorder %s94, %s96
      %p103 = scmp.eq.s32.totalorder %s23, 1
      %p104 = por %p102, %p103
      %p105 = scmp.ne.s32.totalorder %s96, %s97
      %p106 = scmp.eq.s32.totalorder %s23, 0
      %p107 = por %p105, %p106
      %p108 = scmp.ne.s32.totalorder %s96, %s97
      %p109 = scmp.eq.s32.totalorder %s24, 1
      %p110 = por %p108, %p109
      %p112 = scmp.ne.s32.totalorder %s97, %s111
      %p113 = scmp.eq.s32.totalorder %s24, 0
      %p114 = por %p112, %p113
      %s115 = ssub.s32 %s18, %s25
      %p116 = scmp.eq.s32.totalorder %s115, 0
      %s118 = sadd.s32 %s117, 1
      %s119 = scalar_select %p116, %s117, %s118
      %p122 = pneg %p116
      %p123 = scmp.eq.s32.totalorder %s18, 1
      %p124 = por %p122, %p123
      %p125 = scmp.ne.s32.totalorder %s117, %s120
      %p126 = scmp.eq.s32.totalorder %s18, 0
      %p127 = por %p125, %p126
      %p128 = scmp.ne.s32.totalorder %s117, %s120
      %p129 = scmp.eq.s32.totalorder %s23, 1
      %p130 = por %p128, %p129
      %p131 = scmp.ne.s32.totalorder %s120, %s121
      %p132 = scmp.eq.s32.totalorder %s23, 0
      %p133 = por %p131, %p132
      %p134 = scmp.ne.s32.totalorder %s120, %s121
      %p135 = scmp.eq.s32.totalorder %s24, 1
      %p136 = por %p134, %p135
      %p138 = scmp.ne.s32.totalorder %s121, %s137
      %p139 = scmp.eq.s32.totalorder %s24, 0
      %p140 = por %p138, %p139
      %p141 = scmp.le.s32.totalorder 1, %s18
      %p142 = scmp.lt.s32.totalorder %s18, 3
      %p143 = pnand %p141, %p142
      %p144 = pneg %p143
      // Predicated region
      $region9: #{gcn_forward.1} parent=5 // pred_check
        _
      $region10: #{gcn_forward.1} parent=5 // pred_check_branch
        %146 = sbr.rel (%p143) target = $region12
      $region11: #{gcn_forward.1} parent=5 // pred_region
        %s147 = ssub.s32 %s18, 1
        // Predicated region
        $region13: #{gcn_forward.1} parent=11 // pred_check
          %p148 = pneg %p39
        $region14: #{gcn_forward.1} parent=11 // pred_check_branch
          %150 = sbr.rel (%p148) target = $region16
        $region15: #{gcn_forward.1} parent=11 // pred_region
          %s152 = ssub.s32 384, 384
          %153 = vsyncadd [#allocation3], %s152
          %s154 = sshll.u32 [#allocation2], 4
          %s155 = int_to_ptr.vmem [resolvable:$true] %s154
          %160 = dma.hbm_to_vmem [thread:$0]  %s0, 384, %s155, [#allocation3], 128, 128, 8
        $region16: #{gcn_forward.1} parent=11 // pred_fallthru
          _
        // Predicated region
        $region17: #{gcn_forward.1} parent=11 // pred_check
          %p161 = pneg %p86
        $region18: #{gcn_forward.1} parent=11 // pred_check_branch
          %163 = sbr.rel (%p161) target = $region20
        $region19: #{gcn_forward.1} parent=11 // pred_region
          %s165 = ssub.s32 6144, 6144
          %166 = vsyncadd [#allocation6], %s165
          %s167 = sshll.u32 [#allocation7], 4
          %s168 = int_to_ptr.vmem [resolvable:$true] %s167
          %173 = dma.hbm_to_vmem [thread:$0]  %s2, 6144, %s168, [#allocation6], 128, 128, 8
        $region20: #{gcn_forward.1} parent=11 // pred_fallthru
          _
        // Predicated region
        $region21: #{gcn_forward.1} parent=11 // pred_check
          %p174 = pneg %p107
        $region22: #{gcn_forward.1} parent=11 // pred_check_branch
          %176 = sbr.rel (%p174) target = $region24
        $region23: #{gcn_forward.1} parent=11 // pred_region
          %s178 = ssub.s32 16, 16
          %179 = vsyncadd [#allocation9], %s178
          %s181 = sshll.u32 [#allocation8], 4
          %s182 = int_to_ptr.vmem [resolvable:$true] %s181
          %184 = dma.hbm_to_vmem [thread:$0]  %s3, 16, %s182, [#allocation9]
        $region24: #{gcn_forward.1} parent=11 // pred_fallthru
          _
      $region12: #{gcn_forward.1} parent=5 // pred_fallthru
        _
      %p185 = scmp.lt.s32.totalorder %s18, 2
      // Predicated region
      $region25: #{gcn_forward.1} parent=5 // pred_check
        %p186 = pneg %p185
      $region26: #{gcn_forward.1} parent=5 // pred_check_branch
        %188 = sbr.rel (%p186) target = $region28
      $region27: #{gcn_forward.1} parent=5 // pred_region
        // Predicated region
        $region29: #{gcn_forward.1} parent=27 // pred_check
          %p189 = pneg %p59
        $region30: #{gcn_forward.1} parent=27 // pred_check_branch
          %191 = sbr.rel (%p189) target = $region32
        $region31: #{gcn_forward.1} parent=27 // pred_region
          %s192 = sand.u32 %s18, 1
          %s193 = scalar_lea.sflag [#allocation6], %s192
          %s194 = sand.u32 %s49, 1
          %s195 = smul.addr %s194, 8
          %s196 = scalar_lea.vmem [#allocation5], %s195
          %s198 = ssub.s32 128, 128
          %199 = vsyncadd %s193, %s198
          %s200 = smul.addr %s18, 128
          %s201 = scalar_lea.hbm %s1, %s200
          %s203 = sshll.u32 %s196, 4
          %s204 = int_to_ptr.vmem [resolvable:$true] %s203
          %206 = dma.hbm_to_vmem [thread:$0]  %s201, 128, %s204, %s193
        $region32: #{gcn_forward.1} parent=27 // pred_fallthru
          _
      $region28: #{gcn_forward.1} parent=5 // pred_fallthru
        _
      %p207 = scmp.le.s32.totalorder 1, %s18
      %p208 = scmp.lt.s32.totalorder %s18, 3
      %p209 = pnand %p207, %p208
      %p210 = pneg %p209
      // Predicated region
      $region33: #{gcn_forward.1} parent=5 // pred_check
        _
      $region34: #{gcn_forward.1} parent=5 // pred_check_branch
        %212 = sbr.rel (%p209) target = $region36
      $region35: #{gcn_forward.1} parent=5 // pred_region
        %s213 = ssub.s32 %s18, 1
        // Predicated region
        $region37: #{gcn_forward.1} parent=35 // pred_check
          %p214 = pneg %p39
        $region38: #{gcn_forward.1} parent=35 // pred_check_branch
          %216 = sbr.rel (%p214) target = $region40
        $region39: #{gcn_forward.1} parent=35 // pred_region
          %217 = dma.done [#allocation3], 384
        $region40: #{gcn_forward.1} parent=35 // pred_fallthru
          _
        %s218 = sand.u32 %s23, 1
        %s219 = scalar_lea.sflag [#allocation6], %s218
        %s220 = sand.u32 %s52, 1
        %s221 = smul.addr %s220, 8
        %s222 = scalar_lea.vmem [#allocation5], %s221
        // Predicated region
        $region41: #{gcn_forward.1} parent=35 // pred_check
          %p223 = pneg %p65
        $region42: #{gcn_forward.1} parent=35 // pred_check_branch
          %225 = sbr.rel (%p223) target = $region44
        $region43: #{gcn_forward.1} parent=35 // pred_region
          %226 = dma.done %s219, 128
        $region44: #{gcn_forward.1} parent=35 // pred_fallthru
          _
        // Predicated region
        $region45: #{gcn_forward.1} parent=35 // pred_check
          %p227 = pneg %p86
        $region46: #{gcn_forward.1} parent=35 // pred_check_branch
          %229 = sbr.rel (%p227) target = $region48
        $region47: #{gcn_forward.1} parent=35 // pred_region
          %230 = dma.done [#allocation6], 6144
        $region48: #{gcn_forward.1} parent=35 // pred_fallthru
          _
        // Predicated region
        $region49: #{gcn_forward.1} parent=35 // pred_check
          %p231 = pneg %p107
        $region50: #{gcn_forward.1} parent=35 // pred_check_branch
          %233 = sbr.rel (%p231) target = $region52
        $region51: #{gcn_forward.1} parent=35 // pred_region
          %234 = dma.done [#allocation9], 16
        $region52: #{gcn_forward.1} parent=35 // pred_fallthru
          _
        %p235 = pneg %p39
        %p236 = pneg %p36
        %s237 = sand.u32 %s23, 1
        %s238 = scalar_lea.sflag [#allocation6], %s237
        %s239 = sand.u32 %s52, 1
        %s240 = smul.addr %s239, 8
        %s241 = scalar_lea.vmem [#allocation5], %s240
        %p242 = pneg %p65
        %p243 = pneg %p62
        %p244 = pneg %p86
        %p245 = pneg %p83
        %p246 = pneg %p107
        %p247 = pneg %p104
        %p248 = pneg %p133
        %p249 = pneg %p130
        %s250 = sand.u32 %s120, 1
        %s251 = scalar_lea.sflag [#allocation4], %s250
        %s252 = sand.u32 %s120, 1
        %s253 = smul.addr %s252, 8
        %s254 = scalar_lea.vmem [#allocation10], %s253
        %v255 = vld [vmem:[#allocation2] sm:$0xff]
        %v256 = vld [vmem:[#allocation2 + $0x8] sm:$0xff]
        %v257 = vld [vmem:[#allocation2 + $0x10] sm:$0xff]
        %v258 = vld [vmem:[%s222] sm:$0xff]
        %v259 = vld [vmem:[#allocation7] sm:$0xff]
        %v260 = vld [vmem:[#allocation7 + $0x8] sm:$0xff]
        %v261 = vld [vmem:[#allocation7 + $0x10] sm:$0xff]
        %v262 = vld [vmem:[#allocation7 + $0x18] sm:$0xff]
        %v263 = vld [vmem:[#allocation7 + $0x20] sm:$0xff]
        %v264 = vld [vmem:[#allocation7 + $0x28] sm:$0xff]
        %v265 = vld [vmem:[#allocation7 + $0x30] sm:$0xff]
        %v266 = vld [vmem:[#allocation7 + $0x38] sm:$0xff]
        %v267 = vld [vmem:[#allocation7 + $0x40] sm:$0xff]
        %v268 = vld [vmem:[#allocation7 + $0x48] sm:$0xff]
        %v269 = vld [vmem:[#allocation7 + $0x50] sm:$0xff]
        %v270 = vld [vmem:[#allocation7 + $0x58] sm:$0xff]
        %v271 = vld [vmem:[#allocation7 + $0x60] sm:$0xff]
        %v272 = vld [vmem:[#allocation7 + $0x68] sm:$0xff]
        %v273 = vld [vmem:[#allocation7 + $0x70] sm:$0xff]
        %v274 = vld [vmem:[#allocation7 + $0x78] sm:$0xff]
        %vm275 = vcmask 64512
        %v277 = vsel %vm275, %v255, 0
        %v280 = vsel %vm275, %v256, 0
        %v283 = vsel %vm275, %v257, 0
        %285 = vmatprep.subr.mxu0 0.0
        %286 = vmatpush1.msra.mxu0 %v258
        %287 = vmatprep.subr.mxu0 0.0
        %288 = vmatpush1.msra.mxu0 0.0
        %289 = vmatprep.subr.mxu0 0.0
        %290 = vmatpush1.msra.mxu0 0.0
        %291 = vmatprep.subr.mxu0 0.0
        %292 = vmatpush1.msra.mxu0 0.0
        %293 = vmatprep.subr.mxu0 0.0
        %294 = vmatpush1.msra.mxu0 0.0
        %295 = vmatprep.subr.mxu0 0.0
        %296 = vmatpush1.msra.mxu0 0.0
        %297 = vmatprep.subr.mxu0 0.0
        %298 = vmatpush1.msra.mxu0 0.0
        %299 = vmatprep.subr.mxu0 0.0
        %300 = vmatpush1.msra.mxu0 0.0
        %301 = vmatprep.subr.mxu0 0.0
        %302 = vmatpush1.msra.mxu0 0.0
        %303 = vmatprep.subr.mxu0 0.0
        %304 = vmatpush1.msra.mxu0 0.0
        %305 = vmatprep.subr.mxu0 0.0
        %306 = vmatpush1.msra.mxu0 0.0
        %307 = vmatprep.subr.mxu0 0.0
        %308 = vmatpush1.msra.mxu0 0.0
        %309 = vmatprep.subr.mxu0 0.0
        %310 = vmatpush1.msra.mxu0 0.0
        %311 = vmatprep.subr.mxu0 0.0
        %312 = vmatpush1.msra.mxu0 0.0
        %313 = vmatprep.subr.mxu0 0.0
        %314 = vmatpush1.msra.mxu0 0.0
        %315 = vmatprep.subr.mxu0 0.0
        %316 = vmatpush1.msra.mxu0 0.0
        %317 = vmatprep.subr.mxu0 0.0
        %318 = vmatpush1.msra.mxu0 0.0
        %319 = vmatprep.subr.mxu0 0.0
        %320 = vmatpush1.msra.mxu0 0.0
        %321 = vmatprep.subr.mxu0 0.0
        %322 = vmatpush1.msra.mxu0 0.0
        %323 = vmatprep.subr.mxu0 0.0
        %324 = vmatpush1.msra.mxu0 0.0
        %325 = vmatprep.subr.mxu0 0.0
        %326 = vmatpush1.msra.mxu0 0.0
        %327 = vmatprep.subr.mxu0 0.0
        %328 = vmatpush1.msra.mxu0 0.0
        %329 = vmatprep.subr.mxu0 0.0
        %330 = vmatpush1.msra.mxu0 0.0
        %331 = vmatprep.subr.mxu0 0.0
        %332 = vmatpush1.msra.mxu0 0.0
        %333 = vmatprep.subr.mxu0 0.0
        %334 = vmatpush1.msra.mxu0 0.0
        %335 = vmatprep.subr.mxu0 0.0
        %336 = vmatpush1.msra.mxu0 0.0
        %337 = vmatprep.subr.mxu0 0.0
        %338 = vmatpush1.msra.mxu0 0.0
        %339 = vmatprep.subr.mxu0 0.0
        %340 = vmatpush1.msra.mxu0 0.0
        %341 = vmatprep.subr.mxu0 0.0
        %342 = vmatpush1.msra.mxu0 0.0
        %343 = vmatprep.subr.mxu0 0.0
        %344 = vmatpush1.msra.mxu0 0.0
        %345 = vmatprep.subr.mxu0 0.0
        %346 = vmatpush1.msra.mxu0 0.0
        %347 = vmatprep.subr.mxu0 0.0
        %348 = vmatpush1.msra.mxu0 0.0
        %349 = vmatprep.mubr.f32.mxu0 0.0
        %350 = vmatmul.mubr.f32.gmra.mrb[0].mxu0 %v277
        %v351 = vpop.f32.mrb[0].mxu0
        %v352 = vadd.f32 0.0, %v351
        %v353 = vpop.f32.mrb[0].mxu0
        %354 = vmatprep.mubr.f32.mxu0 0.0
        %355 = vmatmul.mubr.f32.gmra.mrb[0].mxu0 %v280
        %v356 = vpop.f32.mrb[0].mxu0
        %v357 = vadd.f32 0.0, %v356
        %v358 = vpop.f32.mrb[0].mxu0
        %359 = vmatprep.mubr.f32.mxu0 0.0
        %360 = vmatmul.mubr.f32.gmra.mrb[0].mxu0 %v283
        %v361 = vpop.f32.mrb[0].mxu0
        %v362 = vadd.f32 0.0, %v361
        %v363 = vpop.f32.mrb[0].mxu0
        %364 = vdwg.mxu0
        %v365 = vadd.f32 %v362, %v357
        %v366 = vxor.u32 %v365, 2147483648
        %v367 = vmul.f32 %v366, 1.442695
        %v368 = vpow.pop %v367
        %v369 = vadd.f32 %v368, 1.0
        %v370 = vrcp.pop %v369
        %v371 = vmul.f32 1.0, %v370
        %v372 = vmul.f32 %v352, %v371
        %v373 = vadd.f32 %v352, %v362
        %v374 = vxor.u32 %v373, 2147483648
        %v375 = vmul.f32 %v374, 1.442695
        %v376 = vpow.pop %v375
        %v377 = vadd.f32 %v376, 1.0
        %v378 = vrcp.pop %v377
        %v379 = vmul.f32 1.0, %v378
        %v380 = vmul.f32 %v357, %v379
        %v381 = vadd.f32 %v372, %v380
        %v382 = vadd.f32 %v352, %v357
        %v383 = vxor.u32 %v382, 2147483648
        %v384 = vmul.f32 %v383, 1.442695
        %v385 = vpow.pop %v384
        %v386 = vadd.f32 %v385, 1.0
        %v387 = vrcp.pop %v386
        %v388 = vmul.f32 1.0, %v387
        %v389 = vmul.f32 %v362, %v388
        %v390 = vadd.f32 %v381, %v389
        %v391 = vxor.u32 %v390, 2147483648
        %v392 = vmul.f32 %v391, 1.442695
        %v393 = vpow.pop %v392
        %v394 = vadd.f32 %v393, 1.0
        %v395 = vrcp.pop %v394
        %v396 = vmul.f32 1.0, %v395
        %v397 = vadd.f32 %v258, %v396
        %v398 = vxor.u32 %v397, 2147483648
        %v399 = vmul.f32 %v398, 1.442695
        %v400 = vpow.pop %v399
        %v401 = vadd.f32 %v400, 1.0
        %v402 = vrcp.pop %v401
        %v403 = vmul.f32 1.0, %v402
        %v404 = vtanh.pop %v397
        %v405 = vmul.f32 %v403, %v404
        %s406 = scalar_lea.vmem [#allocation7], 128
        %v407 = vld [vmem:[%s406] sm:$0xff]
        %v408 = vld [vmem:[%s406 + $0x8] sm:$0xff]
        %v409 = vld [vmem:[%s406 + $0x10] sm:$0xff]
        %v410 = vld [vmem:[%s406 + $0x18] sm:$0xff]
        %v411 = vld [vmem:[%s406 + $0x20] sm:$0xff]
        %v412 = vld [vmem:[%s406 + $0x28] sm:$0xff]
        %v413 = vld [vmem:[%s406 + $0x30] sm:$0xff]
        %v414 = vld [vmem:[%s406 + $0x38] sm:$0xff]
        %v415 = vld [vmem:[%s406 + $0x40] sm:$0xff]
        %v416 = vld [vmem:[%s406 + $0x48] sm:$0xff]
        %v417 = vld [vmem:[%s406 + $0x50] sm:$0xff]
        %v418 = vld [vmem:[%s406 + $0x58] sm:$0xff]
        %v419 = vld [vmem:[%s406 + $0x60] sm:$0xff]
        %v420 = vld [vmem:[%s406 + $0x68] sm:$0xff]
        %v421 = vld [vmem:[%s406 + $0x70] sm:$0xff]
        %v422 = vld [vmem:[%s406 + $0x78] sm:$0xff]
        %423 = vmatprep.subr.mxu0 0.0
        %424 = vmatpush1.msra.mxu0 %v407
        %425 = vmatprep.subr.mxu0 0.0
        %426 = vmatpush1.msra.mxu0 %v408
        %427 = vmatprep.subr.mxu0 0.0
        %428 = vmatpush1.msra.mxu0 %v409
        %429 = vmatprep.subr.mxu0 0.0
        %430 = vmatpush1.msra.mxu0 %v410
        %431 = vmatprep.subr.mxu0 0.0
        %432 = vmatpush1.msra.mxu0 %v411
        %433 = vmatprep.subr.mxu0 0.0
        %434 = vmatpush1.msra.mxu0 %v412
        %435 = vmatprep.subr.mxu0 0.0
        %436 = vmatpush1.msra.mxu0 %v413
        %437 = vmatprep.subr.mxu0 0.0
        %438 = vmatpush1.msra.mxu0 %v414
        %439 = vmatprep.subr.mxu0 0.0
        %440 = vmatpush1.msra.mxu0 %v415
        %441 = vmatprep.subr.mxu0 0.0
        %442 = vmatpush1.msra.mxu0 %v416
        %443 = vmatprep.subr.mxu0 0.0
        %444 = vmatpush1.msra.mxu0 %v417
        %445 = vmatprep.subr.mxu0 0.0
        %446 = vmatpush1.msra.mxu0 %v418
        %447 = vmatprep.subr.mxu0 0.0
        %448 = vmatpush1.msra.mxu0 %v419
        %449 = vmatprep.subr.mxu0 0.0
        %450 = vmatpush1.msra.mxu0 %v420
        %451 = vmatprep.subr.mxu0 0.0
        %452 = vmatpush1.msra.mxu0 %v421
        %453 = vmatprep.subr.mxu0 0.0
        %454 = vmatpush1.msra.mxu0 %v422
        %455 = vmatprep.subr.mxu0 0.0
        %456 = vmatpush1.msra.mxu0 0.0
        %457 = vmatprep.subr.mxu0 0.0
        %458 = vmatpush1.msra.mxu0 0.0
        %459 = vmatprep.subr.mxu0 0.0
        %460 = vmatpush1.msra.mxu0 0.0
        %461 = vmatprep.subr.mxu0 0.0
        %462 = vmatpush1.msra.mxu0 0.0
        %463 = vmatprep.subr.mxu0 0.0
        %464 = vmatpush1.msra.mxu0 0.0
        %465 = vmatprep.subr.mxu0 0.0
        %466 = vmatpush1.msra.mxu0 0.0
        %467 = vmatprep.subr.mxu0 0.0
        %468 = vmatpush1.msra.mxu0 0.0
        %469 = vmatprep.subr.mxu0 0.0
        %470 = vmatpush1.msra.mxu0 0.0
        %471 = vmatprep.subr.mxu0 0.0
        %472 = vmatpush1.msra.mxu0 0.0
        %473 = vmatprep.subr.mxu0 0.0
        %474 = vmatpush1.msra.mxu0 0.0
        %475 = vmatprep.subr.mxu0 0.0
        %476 = vmatpush1.msra.mxu0 0.0
        %477 = vmatprep.subr.mxu0 0.0
        %478 = vmatpush1.msra.mxu0 0.0
        %479 = vmatprep.subr.mxu0 0.0
        %480 = vmatpush1.msra.mxu0 0.0
        %481 = vmatprep.subr.mxu0 0.0
        %482 = vmatpush1.msra.mxu0 0.0
        %483 = vmatprep.subr.mxu0 0.0
        %484 = vmatpush1.msra.mxu0 0.0
        %485 = vmatprep.subr.mxu0 0.0
        %486 = vmatpush1.msra.mxu0 0.0
        %487 = vmatprep.mubr.f32.mxu0 0.0
        %488 = vmatmul.mubr.f32.gmra.mrb[0].mxu0 %v405
        %v489 = vpop.f32.mrb[0].mxu0
        %v490 = vadd.f32 0.0, %v489
        %v491 = vpop.f32.mrb[0].mxu0
        %492 = vdwg.mxu0
        %493 = vmatprep.subr.mxu0 0.0
        %494 = vmatpush1.msra.mxu0 %v259
        %495 = vmatprep.subr.mxu0 0.0
        %496 = vmatpush1.msra.mxu0 %v260
        %497 = vmatprep.subr.mxu0 0.0
        %498 = vmatpush1.msra.mxu0 %v261
        %499 = vmatprep.subr.mxu0 0.0
        %500 = vmatpush1.msra.mxu0 %v262
        %501 = vmatprep.subr.mxu0 0.0
        %502 = vmatpush1.msra.mxu0 %v263
        %503 = vmatprep.subr.mxu0 0.0
        %504 = vmatpush1.msra.mxu0 %v264
        %505 = vmatprep.subr.mxu0 0.0
        %506 = vmatpush1.msra.mxu0 %v265
        %507 = vmatprep.subr.mxu0 0.0
        %508 = vmatpush1.msra.mxu0 %v266
        %509 = vmatprep.subr.mxu0 0.0
        %510 = vmatpush1.msra.mxu0 %v267
        %511 = vmatprep.subr.mxu0 0.0
        %512 = vmatpush1.msra.mxu0 %v268
        %513 = vmatprep.subr.mxu0 0.0
        %514 = vmatpush1.msra.mxu0 %v269
        %515 = vmatprep.subr.mxu0 0.0
        %516 = vmatpush1.msra.mxu0 %v270
        %517 = vmatprep.subr.mxu0 0.0
        %518 = vmatpush1.msra.mxu0 %v271
        %519 = vmatprep.subr.mxu0 0.0
        %520 = vmatpush1.msra.mxu0 %v272
        %521 = vmatprep.subr.mxu0 0.0
        %522 = vmatpush1.msra.mxu0 %v273
        %523 = vmatprep.subr.mxu0 0.0
        %524 = vmatpush1.msra.mxu0 %v274
        %525 = vmatprep.subr.mxu0 0.0
        %526 = vmatpush1.msra.mxu0 0.0
        %527 = vmatprep.subr.mxu0 0.0
        %528 = vmatpush1.msra.mxu0 0.0
        %529 = vmatprep.subr.mxu0 0.0
        %530 = vmatpush1.msra.mxu0 0.0
        %531 = vmatprep.subr.mxu0 0.0
        %532 = vmatpush1.msra.mxu0 0.0
        %533 = vmatprep.subr.mxu0 0.0
        %534 = vmatpush1.msra.mxu0 0.0
        %535 = vmatprep.subr.mxu0 0.0
        %536 = vmatpush1.msra.mxu0 0.0
        %537 = vmatprep.subr.mxu0 0.0
        %538 = vmatpush1.msra.mxu0 0.0
        %539 = vmatprep.subr.mxu0 0.0
        %540 = vmatpush1.msra.mxu0 0.0
        %541 = vmatprep.subr.mxu0 0.0
        %542 = vmatpush1.msra.mxu0 0.0
        %543 = vmatprep.subr.mxu0 0.0
        %544 = vmatpush1.msra.mxu0 0.0
        %545 = vmatprep.subr.mxu0 0.0
        %546 = vmatpush1.msra.mxu0 0.0
        %547 = vmatprep.subr.mxu0 0.0
        %548 = vmatpush1.msra.mxu0 0.0
        %549 = vmatprep.subr.mxu0 0.0
        %550 = vmatpush1.msra.mxu0 0.0
        %551 = vmatprep.subr.mxu0 0.0
        %552 = vmatpush1.msra.mxu0 0.0
        %553 = vmatprep.subr.mxu0 0.0
        %554 = vmatpush1.msra.mxu0 0.0
        %555 = vmatprep.subr.mxu0 0.0
        %556 = vmatpush1.msra.mxu0 0.0
        %557 = vmatprep.mubr.f32.mxu0 0.0
        %558 = vmatmul.mubr.f32.gmra.mrb[0].mxu0 %v258
        %v559 = vpop.f32.mrb[0].mxu0
        %v560 = vadd.f32 %v490, %v559
        %v561 = vpop.f32.mrb[0].mxu0
        %562 = vdwg.mxu0
        %563 = vmatprep.subr.mxu0 0.0
        %564 = vmatpush1.msra.mxu0 %v405
        %565 = vmatprep.subr.mxu0 0.0
        %566 = vmatpush1.msra.mxu0 0.0
        %567 = vmatprep.subr.mxu0 0.0
        %568 = vmatpush1.msra.mxu0 0.0
        %569 = vmatprep.subr.mxu0 0.0
        %570 = vmatpush1.msra.mxu0 0.0
        %571 = vmatprep.subr.mxu0 0.0
        %572 = vmatpush1.msra.mxu0 0.0
        %573 = vmatprep.subr.mxu0 0.0
        %574 = vmatpush1.msra.mxu0 0.0
        %575 = vmatprep.subr.mxu0 0.0
        %576 = vmatpush1.msra.mxu0 0.0
        %577 = vmatprep.subr.mxu0 0.0
        %578 = vmatpush1.msra.mxu0 0.0
        %579 = vmatprep.subr.mxu0 0.0
        %580 = vmatpush1.msra.mxu0 0.0
        %581 = vmatprep.subr.mxu0 0.0
        %582 = vmatpush1.msra.mxu0 0.0
        %583 = vmatprep.subr.mxu0 0.0
        %584 = vmatpush1.msra.mxu0 0.0
        %585 = vmatprep.subr.mxu0 0.0
        %586 = vmatpush1.msra.mxu0 0.0
        %587 = vmatprep.subr.mxu0 0.0
        %588 = vmatpush1.msra.mxu0 0.0
        %589 = vmatprep.subr.mxu0 0.0
        %590 = vmatpush1.msra.mxu0 0.0
        %591 = vmatprep.subr.mxu0 0.0
        %592 = vmatpush1.msra.mxu0 0.0
        %593 = vmatprep.subr.mxu0 0.0
        %594 = vmatpush1.msra.mxu0 0.0
        %595 = vmatprep.subr.mxu0 0.0
        %596 = vmatpush1.msra.mxu0 0.0
        %597 = vmatprep.subr.mxu0 0.0
        %598 = vmatpush1.msra.mxu0 0.0
        %599 = vmatprep.subr.mxu0 0.0
        %600 = vmatpush1.msra.mxu0 0.0
        %601 = vmatprep.subr.mxu0 0.0
        %602 = vmatpush1.msra.mxu0 0.0
        %603 = vmatprep.subr.mxu0 0.0
        %604 = vmatpush1.msra.mxu0 0.0
        %605 = vmatprep.subr.mxu0 0.0
        %606 = vmatpush1.msra.mxu0 0.0
        %607 = vmatprep.subr.mxu0 0.0
        %608 = vmatpush1.msra.mxu0 0.0
        %609 = vmatprep.subr.mxu0 0.0
        %610 = vmatpush1.msra.mxu0 0.0
        %611 = vmatprep.subr.mxu0 0.0
        %612 = vmatpush1.msra.mxu0 0.0
        %613 = vmatprep.subr.mxu0 0.0
        %614 = vmatpush1.msra.mxu0 0.0
        %615 = vmatprep.subr.mxu0 0.0
        %616 = vmatpush1.msra.mxu0 0.0
        %617 = vmatprep.subr.mxu0 0.0
        %618 = vmatpush1.msra.mxu0 0.0
        %619 = vmatprep.subr.mxu0 0.0
        %620 = vmatpush1.msra.mxu0 0.0
        %621 = vmatprep.subr.mxu0 0.0
        %622 = vmatpush1.msra.mxu0 0.0
        %623 = vmatprep.subr.mxu0 0.0
        %624 = vmatpush1.msra.mxu0 0.0
        %625 = vmatprep.subr.mxu0 0.0
        %626 = vmatpush1.msra.mxu0 0.0
        %627 = vmatprep.mubr.f32.mxu0 0.0
        %628 = vmatmul.mubr.f32.gmra.mrb[0].mxu0 %v277
        %v629 = vpop.f32.mrb[0].mxu0
        %v630 = vadd.f32 0.0, %v629
        %v631 = vpop.f32.mrb[0].mxu0
        %632 = vmatprep.mubr.f32.mxu0 0.0
        %633 = vmatmul.mubr.f32.gmra.mrb[0].mxu0 %v280
        %v634 = vpop.f32.mrb[0].mxu0
        %v635 = vadd.f32 0.0, %v634
        %v636 = vpop.f32.mrb[0].mxu0
        %637 = vmatprep.mubr.f32.mxu0 0.0
        %638 = vmatmul.mubr.f32.gmra.mrb[0].mxu0 %v283
        %v639 = vpop.f32.mrb[0].mxu0
        %v640 = vadd.f32 0.0, %v639
        %v641 = vpop.f32.mrb[0].mxu0
        %642 = vdwg.mxu0
        %v643 = vadd.f32 %v640, %v635
        %v644 = vxor.u32 %v643, 2147483648
        %v645 = vmul.f32 %v644, 1.442695
        %v646 = vpow.pop %v645
        %v647 = vadd.f32 %v646, 1.0
        %v648 = vrcp.pop %v647
        %v649 = vmul.f32 1.0, %v648
        %v650 = vmul.f32 %v630, %v649
        %v651 = vadd.f32 %v630, %v640
        %v652 = vxor.u32 %v651, 2147483648
        %v653 = vmul.f32 %v652, 1.442695
        %v654 = vpow.pop %v653
        %v655 = vadd.f32 %v654, 1.0
        %v656 = vrcp.pop %v655
        %v657 = vmul.f32 1.0, %v656
        %v658 = vmul.f32 %v635, %v657
        %v659 = vadd.f32 %v650, %v658
        %v660 = vadd.f32 %v630, %v635
        %v661 = vxor.u32 %v660, 2147483648
        %v662 = vmul.f32 %v661, 1.442695
        %v663 = vpow.pop %v662
        %v664 = vadd.f32 %v663, 1.0
        %v665 = vrcp.pop %v664
        %v666 = vmul.f32 1.0, %v665
        %v667 = vmul.f32 %v640, %v666
        %v668 = vadd.f32 %v659, %v667
        %v669 = vxor.u32 %v668, 2147483648
        %v670 = vmul.f32 %v669, 1.442695
        %v671 = vpow.pop %v670
        %v672 = vadd.f32 %v671, 1.0
        %v673 = vrcp.pop %v672
        %v674 = vmul.f32 1.0, %v673
        %v675 = vadd.f32 %v258, %v674
        %v676 = vxor.u32 %v675, 2147483648
        %v677 = vmul.f32 %v676, 1.442695
        %v678 = vpow.pop %v677
        %v679 = vadd.f32 %v678, 1.0
        %v680 = vrcp.pop %v679
        %v681 = vmul.f32 1.0, %v680
        %v682 = vtanh.pop %v675
        %v683 = vmul.f32 %v681, %v682
        %s684 = scalar_lea.vmem [#allocation7], 256
        %v685 = vld [vmem:[%s684] sm:$0xff]
        %v686 = vld [vmem:[%s684 + $0x8] sm:$0xff]
        %v687 = vld [vmem:[%s684 + $0x10] sm:$0xff]
        %v688 = vld [vmem:[%s684 + $0x18] sm:$0xff]
        %v689 = vld [vmem:[%s684 + $0x20] sm:$0xff]
        %v690 = vld [vmem:[%s684 + $0x28] sm:$0xff]
        %v691 = vld [vmem:[%s684 + $0x30] sm:$0xff]
        %v692 = vld [vmem:[%s684 + $0x38] sm:$0xff]
        %v693 = vld [vmem:[%s684 + $0x40] sm:$0xff]
        %v694 = vld [vmem:[%s684 + $0x48] sm:$0xff]
        %v695 = vld [vmem:[%s684 + $0x50] sm:$0xff]
        %v696 = vld [vmem:[%s684 + $0x58] sm:$0xff]
        %v697 = vld [vmem:[%s684 + $0x60] sm:$0xff]
        %v698 = vld [vmem:[%s684 + $0x68] sm:$0xff]
        %v699 = vld [vmem:[%s684 + $0x70] sm:$0xff]
        %v700 = vld [vmem:[%s684 + $0x78] sm:$0xff]
        %701 = vmatprep.subr.mxu0 0.0
        %702 = vmatpush1.msra.mxu0 %v685
        %703 = vmatprep.subr.mxu0 0.0
        %704 = vmatpush1.msra.mxu0 %v686
        %705 = vmatprep.subr.mxu0 0.0
        %706 = vmatpush1.msra.mxu0 %v687
        %707 = vmatprep.subr.mxu0 0.0
        %708 = vmatpush1.msra.mxu0 %v688
        %709 = vmatprep.subr.mxu0 0.0
        %710 = vmatpush1.msra.mxu0 %v689
        %711 = vmatprep.subr.mxu0 0.0
        %712 = vmatpush1.msra.mxu0 %v690
        %713 = vmatprep.subr.mxu0 0.0
        %714 = vmatpush1.msra.mxu0 %v691
        %715 = vmatprep.subr.mxu0 0.0
        %716 = vmatpush1.msra.mxu0 %v692
        %717 = vmatprep.subr.mxu0 0.0
        %718 = vmatpush1.msra.mxu0 %v693
        %719 = vmatprep.subr.mxu0 0.0
        %720 = vmatpush1.msra.mxu0 %v694
        %721 = vmatprep.subr.mxu0 0.0
        %722 = vmatpush1.msra.mxu0 %v695
        %723 = vmatprep.subr.mxu0 0.0
        %724 = vmatpush1.msra.mxu0 %v696
        %725 = vmatprep.subr.mxu0 0.0
        %726 = vmatpush1.msra.mxu0 %v697
        %727 = vmatprep.subr.mxu0 0.0
        %728 = vmatpush1.msra.mxu0 %v698
        %729 = vmatprep.subr.mxu0 0.0
        %730 = vmatpush1.msra.mxu0 %v699
        %731 = vmatprep.subr.mxu0 0.0
        %732 = vmatpush1.msra.mxu0 %v700
        %733 = vmatprep.subr.mxu0 0.0
        %734 = vmatpush1.msra.mxu0 0.0
        %735 = vmatprep.subr.mxu0 0.0
        %736 = vmatpush1.msra.mxu0 0.0
        %737 = vmatprep.subr.mxu0 0.0
        %738 = vmatpush1.msra.mxu0 0.0
        %739 = vmatprep.subr.mxu0 0.0
        %740 = vmatpush1.msra.mxu0 0.0
        %741 = vmatprep.subr.mxu0 0.0
        %742 = vmatpush1.msra.mxu0 0.0
        %743 = vmatprep.subr.mxu0 0.0
        %744 = vmatpush1.msra.mxu0 0.0
        %745 = vmatprep.subr.mxu0 0.0
        %746 = vmatpush1.msra.mxu0 0.0
        %747 = vmatprep.subr.mxu0 0.0
        %748 = vmatpush1.msra.mxu0 0.0
        %749 = vmatprep.subr.mxu0 0.0
        %750 = vmatpush1.msra.mxu0 0.0
        %751 = vmatprep.subr.mxu0 0.0
        %752 = vmatpush1.msra.mxu0 0.0
        %753 = vmatprep.subr.mxu0 0.0
        %754 = vmatpush1.msra.mxu0 0.0
        %755 = vmatprep.subr.mxu0 0.0
        %756 = vmatpush1.msra.mxu0 0.0
        %757 = vmatprep.subr.mxu0 0.0
        %758 = vmatpush1.msra.mxu0 0.0
        %759 = vmatprep.subr.mxu0 0.0
        %760 = vmatpush1.msra.mxu0 0.0
        %761 = vmatprep.subr.mxu0 0.0
        %762 = vmatpush1.msra.mxu0 0.0
        %763 = vmatprep.subr.mxu0 0.0
        %764 = vmatpush1.msra.mxu0 0.0
        %765 = vmatprep.mubr.f32.mxu0 0.0
        %766 = vmatmul.mubr.f32.gmra.mrb[0].mxu0 %v683
        %v767 = vpop.f32.mrb[0].mxu0
        %v768 = vadd.f32 0.0, %v767
        %v769 = vpop.f32.mrb[0].mxu0
        %770 = vdwg.mxu0
        %v771 = vadd.f32 %v560, %v768
        %v772 = vld [vmem:[#allocation8] sm:$0x1]
        %v774 = vlaneseq
        %v775 = vshrl.u32 %v774, 7
        %v776 = vsub.s32 0, %v775
        %v777 = vrot.slane %v772, %v776
        %v779 = vadd.f32 %v771, %v777
        %780 = vst [vmem:[%s254] sm:$0xff] %v779
        %s781 = sand.u32 %s120, 1
        %s782 = scalar_lea.sflag [#allocation4], %s781
        %s783 = sand.u32 %s120, 1
        %s784 = smul.addr %s783, 8
        %s785 = scalar_lea.vmem [#allocation10], %s784
        // Predicated region
        $region53: #{gcn_forward.1} parent=35 // pred_check
          %p786 = pneg %p130
        $region54: #{gcn_forward.1} parent=35 // pred_check_branch
          %788 = sbr.rel (%p786) target = $region56
        $region55: #{gcn_forward.1} parent=35 // pred_region
          %s790 = ssub.s32 128, 128
          %791 = vsyncadd %s782, %s790
          %s792 = smul.addr %s23, 128
          %s793 = scalar_lea.hbm %s4, %s792
          %s795 = sshll.u32 %s785, 4
          %s796 = int_to_ptr.vmem [resolvable:$true] %s795
          %798 = dma.vmem_to_hbm [thread:$0]  %s796, 128, %s793, %s782
        $region56: #{gcn_forward.1} parent=35 // pred_fallthru
          _
      $region36: #{gcn_forward.1} parent=5 // pred_fallthru
        _
      %p799 = scmp.le.s32.totalorder 2, %s18
      // Predicated region
      $region57: #{gcn_forward.1} parent=5 // pred_check
        %p800 = pneg %p799
      $region58: #{gcn_forward.1} parent=5 // pred_check_branch
        %802 = sbr.rel (%p800) target = $region60
      $region59: #{gcn_forward.1} parent=5 // pred_region
        %s803 = ssub.s32 %s18, 2
        // Predicated region
        $region61: #{gcn_forward.1} parent=59 // pred_check
          %p804 = pneg %p136
        $region62: #{gcn_forward.1} parent=59 // pred_check_branch
          %806 = sbr.rel (%p804) target = $region64
        $region63: #{gcn_forward.1} parent=59 // pred_region
          %s807 = sand.u32 %s121, 1
          %s808 = scalar_lea.sflag [#allocation4], %s807
          %s809 = sand.u32 %s121, 1
          %s810 = smul.addr %s809, 8
          %s811 = scalar_lea.vmem [#allocation10], %s810
          %812 = dma.done %s808, 128
        $region64: #{gcn_forward.1} parent=59 // pred_fallthru
          _
      $region60: #{gcn_forward.1} parent=5 // pred_fallthru
        _
    $region6: #{gcn_forward.1} parent=1 // loop_footer
      %s22 = sadd.s32 1, %s18
    $region7: #{gcn_forward.1} parent=1 // loop_footer_branch
      %17 = sbr.rel target = $region3
    $region8: #{gcn_forward.1} parent=1 // loop_exit
      _
    %813 = vsyncpa [#allocation3], 1
    %s814 = scalar_lea.sflag [#allocation3], 1
    %815 = vsyncpa %s814, 1
    %816 = vsyncpa [#allocation6], 1
    %s817 = scalar_lea.sflag [#allocation6], 1
    %818 = vsyncpa %s817, 1
    %819 = vsyncpa [#allocation9], 1
    %820 = vsyncpa [#allocation4], 1
    %s821 = scalar_lea.sflag [#allocation4], 1
    %822 = vsyncpa %s821, 1

</llo_original>
